<compile_context>
chip_gen: v7x
topology: tpu7x:2x2x1
jax: 0.10.0
libtpu: 0.0.40
codegen_flags: <defaults>
</compile_context>

<pallas_src>
import jax
import jax.numpy as jnp
from jax import lax
from jax.experimental import pallas as pl
from jax.experimental.pallas import tpu as pltpu  # noqa: F401  (TPU backend)


def _gru_head_kernel(x_ref, h0_ref, wi_ref, wh_ref, bi_ref, bh_ref,
                     wout_ref, bout_ref, y_ref, hout_ref):
    T = x_ref.shape[0]           # static: number of timesteps resident in VMEM
    H = h0_ref.shape[-1]

    # Load fused weights/biases once; they stay resident across all timesteps.
    wi = wi_ref[...]             # (I, 3H)   gates r|z|n
    wh = wh_ref[...]             # (H, 3H)
    bi = bi_ref[...]             # (1, 3H)
    bh = bh_ref[...]             # (1, 3H)

    def step(t, h):
        x_t = x_ref[pl.ds(t, 1), :]                                        # (1, I)
        gi = jnp.dot(x_t, wi, preferred_element_type=jnp.float32) + bi     # (1, 3H)
        gh = jnp.dot(h,   wh, preferred_element_type=jnp.float32) + bh     # (1, 3H)
        r = jax.nn.sigmoid(gi[:, 0:H] + gh[:, 0:H])
        z = jax.nn.sigmoid(gi[:, H:2 * H] + gh[:, H:2 * H])
        n = jnp.tanh(gi[:, 2 * H:3 * H] + r * gh[:, 2 * H:3 * H])
        return (1.0 - z) * n + z * h

    h = lax.fori_loop(0, T, step, h0_ref[...].astype(jnp.float32), unroll=True)

    # Output Linear head on the (squeezed) final step, matching the module's forward.
    y = jnp.dot(h, wout_ref[...], preferred_element_type=jnp.float32) + bout_ref[...]
    y_ref[...] = y.astype(y_ref.dtype)
    hout_ref[...] = h.astype(hout_ref.dtype)


@jax.jit
def simple_lstm_forward(x, state, params):
    """x: (1, T, input_size) batch_first, state: (1, hidden) -> (y (1, out), h (1, hidden))."""
    B, T, I = x.shape
    if B != 1:
        raise ValueError("module spec is batch=1")  # recurrence is per-sequence
    H = state.shape[-1]
    O = params["w_out"].shape[-1]

    x2d = x.reshape(T, I)        # timesteps become rows (sublane axis)

    y, h_new = pl.pallas_call(
        _gru_head_kernel,
        out_shape=(
            jax.ShapeDtypeStruct((1, O), jnp.float32),
            jax.ShapeDtypeStruct((1, H), jnp.float32),
        ),
        # state (input 1) aliases h_new (output 1): in-place state update across steps.
        input_output_aliases={1: 1},
    )(x2d, state,
      params["w_i"], params["w_h"], params["b_i"], params["b_h"],
      params["w_out"], params["b_out"])
    return y, h_new


def init_params(key, input_size, hidden_size, output_size):
    """Fused-weight layout: W_i (I,3H), W_h (H,3H), gate order r|z|n (PyTorch GRU order)."""
    ks = jax.random.split(key, 6)
    bound = 1.0 / jnp.sqrt(hidden_size)

    def u(k, shape):
        return jax.random.uniform(k, shape, jnp.float32, -bound, bound)

    return {
        "w_i": u(ks[0], (input_size, 3 * hidden_size)),
        "w_h": u(ks[1], (hidden_size, 3 * hidden_size)),
        "b_i": u(ks[2], (1, 3 * hidden_size)),   # b_ir | b_iz | b_in
        "b_h": u(ks[3], (1, 3 * hidden_size)),   # b_hr | b_hz | b_hn
        "w_out": u(ks[4], (hidden_size, output_size)),   # PyTorch (out, hidden) transposed
        "b_out": u(ks[5], (1, output_size)),
    }


def reference_forward(x, state, params):
    """Pure-JAX reference of the PyTorch GRU(1 layer) + Linear forward."""
    B, T, I = x.shape
    H = state.shape[-1]
    h = state
    for t in range(T):
        x_t = x[:, t, :]
        gi = x_t @ params["w_i"] + params["b_i"]
        gh = h @ params["w_h"] + params["b_h"]
        r = jax.nn.sigmoid(gi[:, :H] + gh[:, :H])
        z = jax.nn.sigmoid(gi[:, H:2 * H] + gh[:, H:2 * H])
        n = jnp.tanh(gi[:, 2 * H:] + r * gh[:, 2 * H:])
        h = (1.0 - z) * n + z * h
    y = h @ params["w_out"] + params["b_out"]
    return y, h


if __name__ == "__main__":
    input_size, hidden_size, output_size = 32, 32, 16
    seq_len = 1   # module spec: x is (1, 1, input_size)

    key = jax.random.PRNGKey(0)
    kx, kh, kp = jax.random.split(key, 3)

    x = jax.random.normal(kx, (1, seq_len, input_size), jnp.float32)
    state = jax.random.normal(kh, (1, hidden_size), jnp.float32)
    params = init_params(kp, input_size, hidden_size, output_size)

    # Reference computed first (state is never donated, but keep ordering bulletproof).
    y_ref, h_ref = reference_forward(x, state, params)

    y, h_new = simple_lstm_forward(x, state, params)
    jax.block_until_ready((y, h_new))

    assert y.shape == (1, output_size) and h_new.shape == (1, hidden_size)
    assert jnp.allclose(y, y_ref, atol=1e-4, rtol=1e-4)
    assert jnp.allclose(h_new, h_ref, atol=1e-4, rtol=1e-4)

    print("KERNEL_OK")
</pallas_src>

<mosaic_0001>
module attributes {stable_mosaic.version = 11 : i64} {
  func.func @_gru_head_kernel(%arg0: memref<1x32xf32, #tpu.memory_space<vmem>>, %arg1: memref<1x32xf32, #tpu.memory_space<vmem>>, %arg2: memref<32x96xf32, #tpu.memory_space<vmem>>, %arg3: memref<32x96xf32, #tpu.memory_space<vmem>>, %arg4: memref<1x96xf32, #tpu.memory_space<vmem>>, %arg5: memref<1x96xf32, #tpu.memory_space<vmem>>, %arg6: memref<32x16xf32, #tpu.memory_space<vmem>>, %arg7: memref<1x16xf32, #tpu.memory_space<vmem>>, %arg8: memref<1x16xf32, #tpu.memory_space<vmem>>, %arg9: memref<1x32xf32, #tpu.memory_space<vmem>>) attributes {dimension_semantics = [], scalar_prefetch = 0 : i64, scratch_operands = 0 : i64, tpu.core_type = #tpu.core_type<tc>} {
    %c0 = arith.constant 0 : index
    %c0_0 = arith.constant 0 : index
    %0 = vector.load %arg2[%c0, %c0_0] : memref<32x96xf32, #tpu.memory_space<vmem>>, vector<32x96xf32>
    %c0_1 = arith.constant 0 : index
    %c0_2 = arith.constant 0 : index
    %1 = vector.load %arg3[%c0_1, %c0_2] : memref<32x96xf32, #tpu.memory_space<vmem>>, vector<32x96xf32>
    %c0_3 = arith.constant 0 : index
    %c0_4 = arith.constant 0 : index
    %2 = vector.load %arg4[%c0_3, %c0_4] : memref<1x96xf32, #tpu.memory_space<vmem>>, vector<1x96xf32>
    %c0_5 = arith.constant 0 : index
    %c0_6 = arith.constant 0 : index
    %3 = vector.load %arg5[%c0_5, %c0_6] : memref<1x96xf32, #tpu.memory_space<vmem>>, vector<1x96xf32>
    %c0_7 = arith.constant 0 : index
    %c0_8 = arith.constant 0 : index
    %4 = vector.load %arg1[%c0_7, %c0_8] : memref<1x32xf32, #tpu.memory_space<vmem>>, vector<1x32xf32>
    %c0_i32 = arith.constant 0 : i32
    %5 = arith.index_cast %c0_i32 : i32 to index
    %c0_9 = arith.constant 0 : index
    %6 = vector.load %arg0[%5, %c0_9] : memref<1x32xf32, #tpu.memory_space<vmem>>, vector<1x32xf32>
    %cst = arith.constant dense<0.000000e+00> : vector<1x96xf32>
    %7 = tpu.matmul %6, %0, %cst {dimension_numbers = #tpu.dot_dimension_numbers<[1], [0], [0], [1], [0, 0, 1, 1], [], []>} : vector<1x32xf32>, vector<32x96xf32>, vector<1x96xf32> -> vector<1x96xf32>
    %8 = arith.addf %7, %2 : vector<1x96xf32>
    %cst_10 = arith.constant dense<0.000000e+00> : vector<1x96xf32>
    %9 = tpu.matmul %4, %1, %cst_10 {dimension_numbers = #tpu.dot_dimension_numbers<[1], [0], [0], [1], [0, 0, 1, 1], [], []>} : vector<1x32xf32>, vector<32x96xf32>, vector<1x96xf32> -> vector<1x96xf32>
    %10 = arith.addf %9, %3 : vector<1x96xf32>
    %11 = vector.extract_strided_slice %8 {offsets = [0, 0], sizes = [1, 32], strides = [1, 1]} : vector<1x96xf32> to vector<1x32xf32>
    %12 = vector.extract_strided_slice %10 {offsets = [0, 0], sizes = [1, 32], strides = [1, 1]} : vector<1x96xf32> to vector<1x32xf32>
    %13 = arith.addf %11, %12 : vector<1x32xf32>
    %14 = arith.negf %13 : vector<1x32xf32>
    %15 = math.exp %14 : vector<1x32xf32>
    %cst_11 = arith.constant 1.000000e+00 : f32
    %16 = vector.broadcast %cst_11 : f32 to vector<1x32xf32>
    %17 = arith.addf %16, %15 : vector<1x32xf32>
    %18 = arith.divf %16, %17 : vector<1x32xf32>
    %19 = vector.extract_strided_slice %8 {offsets = [0, 32], sizes = [1, 32], strides = [1, 1]} : vector<1x96xf32> to vector<1x32xf32>
    %20 = vector.extract_strided_slice %10 {offsets = [0, 32], sizes = [1, 32], strides = [1, 1]} : vector<1x96xf32> to vector<1x32xf32>
    %21 = arith.addf %19, %20 : vector<1x32xf32>
    %22 = arith.negf %21 : vector<1x32xf32>
    %23 = math.exp %22 : vector<1x32xf32>
    %cst_12 = arith.constant 1.000000e+00 : f32
    %24 = vector.broadcast %cst_12 : f32 to vector<1x32xf32>
    %25 = arith.addf %24, %23 : vector<1x32xf32>
    %26 = arith.divf %24, %25 : vector<1x32xf32>
    %27 = vector.extract_strided_slice %8 {offsets = [0, 64], sizes = [1, 32], strides = [1, 1]} : vector<1x96xf32> to vector<1x32xf32>
    %28 = vector.extract_strided_slice %10 {offsets = [0, 64], sizes = [1, 32], strides = [1, 1]} : vector<1x96xf32> to vector<1x32xf32>
    %29 = arith.mulf %18, %28 : vector<1x32xf32>
    %30 = arith.addf %27, %29 : vector<1x32xf32>
    %31 = math.tanh %30 : vector<1x32xf32>
    %cst_13 = arith.constant 1.000000e+00 : f32
    %32 = vector.broadcast %cst_13 : f32 to vector<1x32xf32>
    %33 = arith.subf %32, %26 : vector<1x32xf32>
    %34 = arith.mulf %33, %31 : vector<1x32xf32>
    %35 = arith.mulf %26, %4 : vector<1x32xf32>
    %36 = arith.addf %34, %35 : vector<1x32xf32>
    %c1_i32 = arith.constant 1 : i32
    %c0_14 = arith.constant 0 : index
    %c0_15 = arith.constant 0 : index
    %37 = vector.load %arg6[%c0_14, %c0_15] : memref<32x16xf32, #tpu.memory_space<vmem>>, vector<32x16xf32>
    %cst_16 = arith.constant dense<0.000000e+00> : vector<1x16xf32>
    %38 = tpu.matmul %36, %37, %cst_16 {dimension_numbers = #tpu.dot_dimension_numbers<[1], [0], [0], [1], [0, 0, 1, 1], [], []>} : vector<1x32xf32>, vector<32x16xf32>, vector<1x16xf32> -> vector<1x16xf32>
    %c0_17 = arith.constant 0 : index
    %c0_18 = arith.constant 0 : index
    %39 = vector.load %arg7[%c0_17, %c0_18] : memref<1x16xf32, #tpu.memory_space<vmem>>, vector<1x16xf32>
    %40 = arith.addf %38, %39 : vector<1x16xf32>
    %c0_19 = arith.constant 0 : index
    %c0_20 = arith.constant 0 : index
    %41 = vector.load %arg8[%c0_19, %c0_20] : memref<1x16xf32, #tpu.memory_space<vmem>>, vector<1x16xf32>
    tpu.vector_store %arg8[%c0_19, %c0_20], %40 {strides = array<i32>} : memref<1x16xf32, #tpu.memory_space<vmem>>, vector<1x16xf32>,
    %c0_21 = arith.constant 0 : index
    %c0_22 = arith.constant 0 : index
    %42 = vector.load %arg9[%c0_21, %c0_22] : memref<1x32xf32, #tpu.memory_space<vmem>>, vector<1x32xf32>
    tpu.vector_store %arg9[%c0_21, %c0_22], %36 {strides = array<i32>} : memref<1x32xf32, #tpu.memory_space<vmem>>, vector<1x32xf32>,
    return
  }
}

</mosaic_0001>

<llo_original>
// kernel: simple_lstm_forward.1
$region0: #{simple_lstm_forward.1}
  #allocation0 [shape = 'u32[]', space=smem, size = 0x4, offset = 0x4, fixed_abs, tag = 'smem constant byte address 0x4 - core index']
  #allocation1 [shape = 'u32[144,128]{1,0:T(1,128)}', space=vmem, size = 0x12000, scoped, tag = 'internal scratch']
  %s0 = inlined_call_operand.vmem [shape: f32[1,32], index: 0, kind: input, shape index: {}]
  %s1 = inlined_call_operand.hbm [shape: f32[1,32], index: 1, kind: input, shape index: {}, may-alias: {1,9}]
  %s2 = inlined_call_operand.vmem [shape: f32[32,96], index: 2, kind: input, shape index: {}]
  %s3 = inlined_call_operand.hbm [shape: f32[32,96], index: 3, kind: input, shape index: {}]
  %s4 = inlined_call_operand.vmem [shape: f32[1,96], index: 4, kind: input, shape index: {}]
  %s5 = inlined_call_operand.vmem [shape: f32[1,96], index: 5, kind: input, shape index: {}]
  %s6 = inlined_call_operand.vmem [shape: f32[32,16], index: 6, kind: input, shape index: {}]
  %s7 = inlined_call_operand.vmem [shape: f32[1,16], index: 7, kind: input, shape index: {}]
  %s8 = inlined_call_operand.hbm [shape: f32[1,16], index: 8, kind: output, shape index: {0}]
  %s9 = inlined_call_operand.hbm [shape: f32[1,32], index: 9, kind: output, shape index: {1}, may-alias: {1,9}]
  %10 = xla_tuple %s8, %s9
  %s11 = sld [smem:[#allocation0]]
  $region58: #{simple_lstm_forward.1} parent=0
    _
  %s13 = ssub.s32 1, %s11
  %s14 = scalar_select 0, %s13, %s11
  $region1: #{simple_lstm_forward.1} parent=0
    #allocation2 [shape = 'u8[512]{0}', space=vmem, size = 0x400, scoped, tag = 'input window, operand 1, single buffered']
    #allocation3 [shape = 's32[1]{0}', space=sflag, size = 0x4, scoped, tag = 'scoped memory for simple_lstm_forward.1']
    #allocation4 [shape = 's32[1]{0}', space=sflag, size = 0x4, scoped, tag = 'scoped memory for simple_lstm_forward.1']
    #allocation5 [shape = 'u8[16384]{0}', space=vmem, size = 0x4000, scoped, tag = 'input window, operand 3, single buffered']
    #allocation6 [shape = 's32[1]{0}', space=sflag, size = 0x4, scoped, tag = 'scoped memory for simple_lstm_forward.1']
    #allocation7 [shape = 'u8[512]{0}', space=vmem, size = 0x400, scoped, tag = 'output window, operand 0, single buffered']
    #allocation8 [shape = 'u8[512]{0}', space=vmem, size = 0x400, scoped, tag = 'output window, operand 1, single buffered']
    #allocation9 [shape = 's32[1]{0}', space=sflag, size = 0x4, scoped, tag = 'scoped memory for simple_lstm_forward.1']
    %15 = vsyncpa [#allocation3], 0
    %16 = vsyncpa [#allocation6], 0
    %17 = vsyncpa [#allocation4], 0
    %18 = vsyncpa [#allocation9], 0
    // Predicated region
    $region2: #{simple_lstm_forward.1} parent=1 // pred_check
      _
    $region3: #{simple_lstm_forward.1} parent=1 // pred_check_branch
      %20 = sbr.rel (0) target = $region5
    $region4: #{simple_lstm_forward.1} parent=1 // pred_region
      _
    $region5: #{simple_lstm_forward.1} parent=1 // pred_fallthru
      _
    // Predicated region
    $region6: #{simple_lstm_forward.1} parent=1 // pred_check
      _
    $region7: #{simple_lstm_forward.1} parent=1 // pred_check_branch
      %22 = sbr.rel (0) target = $region9
    $region8: #{simple_lstm_forward.1} parent=1 // pred_region
      %s24 = ssub.s32 16, 16
      %25 = vsyncadd [#allocation3], %s24
      %s27 = sshll.u32 [#allocation2], 4
      %s28 = int_to_ptr.vmem [resolvable:$true] %s27
      %30 = dma.hbm_to_vmem [thread:$0]  %s1, 16, %s28, [#allocation3]
    $region9: #{simple_lstm_forward.1} parent=1 // pred_fallthru
      _
    // Predicated region
    $region10: #{simple_lstm_forward.1} parent=1 // pred_check
      _
    $region11: #{simple_lstm_forward.1} parent=1 // pred_check_branch
      %32 = sbr.rel (0) target = $region13
    $region12: #{simple_lstm_forward.1} parent=1 // pred_region
      _
    $region13: #{simple_lstm_forward.1} parent=1 // pred_fallthru
      _
    // Predicated region
    $region14: #{simple_lstm_forward.1} parent=1 // pred_check
      _
    $region15: #{simple_lstm_forward.1} parent=1 // pred_check_branch
      %34 = sbr.rel (0) target = $region17
    $region16: #{simple_lstm_forward.1} parent=1 // pred_region
      %s36 = ssub.s32 512, 512
      %37 = vsyncadd [#allocation6], %s36
      %s38 = sshll.u32 [#allocation5], 4
      %s39 = int_to_ptr.vmem [resolvable:$true] %s38
      %44 = dma.hbm_to_vmem [thread:$0]  %s3, 512, %s39, [#allocation6], 128, 128, 8
    $region17: #{simple_lstm_forward.1} parent=1 // pred_fallthru
      _
    // Predicated region
    $region18: #{simple_lstm_forward.1} parent=1 // pred_check
      _
    $region19: #{simple_lstm_forward.1} parent=1 // pred_check_branch
      %46 = sbr.rel (0) target = $region21
    $region20: #{simple_lstm_forward.1} parent=1 // pred_region
      _
    $region21: #{simple_lstm_forward.1} parent=1 // pred_fallthru
      _
    // Predicated region
    $region22: #{simple_lstm_forward.1} parent=1 // pred_check
      _
    $region23: #{simple_lstm_forward.1} parent=1 // pred_check_branch
      %48 = sbr.rel (0) target = $region25
    $region24: #{simple_lstm_forward.1} parent=1 // pred_region
      _
    $region25: #{simple_lstm_forward.1} parent=1 // pred_fallthru
      _
    // Predicated region
    $region26: #{simple_lstm_forward.1} parent=1 // pred_check
      _
    $region27: #{simple_lstm_forward.1} parent=1 // pred_check_branch
      %50 = sbr.rel (0) target = $region29
    $region28: #{simple_lstm_forward.1} parent=1 // pred_region
      _
    $region29: #{simple_lstm_forward.1} parent=1 // pred_fallthru
      _
    // Predicated region
    $region30: #{simple_lstm_forward.1} parent=1 // pred_check
      _
    $region31: #{simple_lstm_forward.1} parent=1 // pred_check_branch
      %52 = sbr.rel (0) target = $region33
    $region32: #{simple_lstm_forward.1} parent=1 // pred_region
      _
    $region33: #{simple_lstm_forward.1} parent=1 // pred_fallthru
      _
    // Predicated region
    $region34: #{simple_lstm_forward.1} parent=1 // pred_check
      _
    $region35: #{simple_lstm_forward.1} parent=1 // pred_check_branch
      %54 = sbr.rel (0) target = $region37
    $region36: #{simple_lstm_forward.1} parent=1 // pred_region
      %55 = dma.done [#allocation3], 16
    $region37: #{simple_lstm_forward.1} parent=1 // pred_fallthru
      _
    // Predicated region
    $region38: #{simple_lstm_forward.1} parent=1 // pred_check
      _
    $region39: #{simple_lstm_forward.1} parent=1 // pred_check_branch
      %57 = sbr.rel (0) target = $region41
    $region40: #{simple_lstm_forward.1} parent=1 // pred_region
      %58 = dma.done [#allocation6], 512
    $region41: #{simple_lstm_forward.1} parent=1 // pred_fallthru
      _
    %v59 = vld [vmem:[%s2] sm:$0xff]
    %v60 = vld [vmem:[%s2 + $0x8] sm:$0xff]
    %v61 = vld [vmem:[%s2 + $0x10] sm:$0xff]
    %v62 = vld [vmem:[%s2 + $0x18] sm:$0xff]
    %v63 = vld [vmem:[#allocation5] sm:$0xff]
    %v64 = vld [vmem:[#allocation5 + $0x8] sm:$0xff]
    %v65 = vld [vmem:[#allocation5 + $0x10] sm:$0xff]
    %v66 = vld [vmem:[#allocation5 + $0x18] sm:$0xff]
    %v67 = vld [vmem:[%s4] sm:$0x1]
    %v68 = vld [vmem:[%s5] sm:$0x1]
    %v69 = vld [vmem:[#allocation2] sm:$0x1]
    %v70 = vld [vmem:[%s0] sm:$0x1]
    %vm71 = vcmask 261120
    %v73 = vsel %vm71, %v70, 0
    %75 = vmatprep.subr.mxu0 0.0
    %76 = vmatpush1.msra.mxu0 %v59
    %77 = vmatprep.subr.mxu0 0.0
    %78 = vmatpush1.msra.mxu0 %v60
    %79 = vmatprep.subr.mxu0 0.0
    %80 = vmatpush1.msra.mxu0 %v61
    %81 = vmatprep.subr.mxu0 0.0
    %82 = vmatpush1.msra.mxu0 %v62
    %83 = vmatprep.subr.mxu0 0.0
    %84 = vmatpush1.msra.mxu0 0.0
    %85 = vmatprep.subr.mxu0 0.0
    %86 = vmatpush1.msra.mxu0 0.0
    %87 = vmatprep.subr.mxu0 0.0
    %88 = vmatpush1.msra.mxu0 0.0
    %89 = vmatprep.subr.mxu0 0.0
    %90 = vmatpush1.msra.mxu0 0.0
    %91 = vmatprep.subr.mxu0 0.0
    %92 = vmatpush1.msra.mxu0 0.0
    %93 = vmatprep.subr.mxu0 0.0
    %94 = vmatpush1.msra.mxu0 0.0
    %95 = vmatprep.subr.mxu0 0.0
    %96 = vmatpush1.msra.mxu0 0.0
    %97 = vmatprep.subr.mxu0 0.0
    %98 = vmatpush1.msra.mxu0 0.0
    %99 = vmatprep.subr.mxu0 0.0
    %100 = vmatpush1.msra.mxu0 0.0
    %101 = vmatprep.subr.mxu0 0.0
    %102 = vmatpush1.msra.mxu0 0.0
    %103 = vmatprep.subr.mxu0 0.0
    %104 = vmatpush1.msra.mxu0 0.0
    %105 = vmatprep.subr.mxu0 0.0
    %106 = vmatpush1.msra.mxu0 0.0
    %107 = vmatprep.subr.mxu0 0.0
    %108 = vmatpush1.msra.mxu0 0.0
    %109 = vmatprep.subr.mxu0 0.0
    %110 = vmatpush1.msra.mxu0 0.0
    %111 = vmatprep.subr.mxu0 0.0
    %112 = vmatpush1.msra.mxu0 0.0
    %113 = vmatprep.subr.mxu0 0.0
    %114 = vmatpush1.msra.mxu0 0.0
    %115 = vmatprep.subr.mxu0 0.0
    %116 = vmatpush1.msra.mxu0 0.0
    %117 = vmatprep.subr.mxu0 0.0
    %118 = vmatpush1.msra.mxu0 0.0
    %119 = vmatprep.subr.mxu0 0.0
    %120 = vmatpush1.msra.mxu0 0.0
    %121 = vmatprep.subr.mxu0 0.0
    %122 = vmatpush1.msra.mxu0 0.0
    %123 = vmatprep.subr.mxu0 0.0
    %124 = vmatpush1.msra.mxu0 0.0
    %125 = vmatprep.subr.mxu0 0.0
    %126 = vmatpush1.msra.mxu0 0.0
    %127 = vmatprep.subr.mxu0 0.0
    %128 = vmatpush1.msra.mxu0 0.0
    %129 = vmatprep.subr.mxu0 0.0
    %130 = vmatpush1.msra.mxu0 0.0
    %131 = vmatprep.subr.mxu0 0.0
    %132 = vmatpush1.msra.mxu0 0.0
    %133 = vmatprep.subr.mxu0 0.0
    %134 = vmatpush1.msra.mxu0 0.0
    %135 = vmatprep.subr.mxu0 0.0
    %136 = vmatpush1.msra.mxu0 0.0
    %137 = vmatprep.subr.mxu0 0.0
    %138 = vmatpush1.msra.mxu0 0.0
    %139 = vmatprep.mubr.f32.mxu0 0.0
    %140 = vmatmul.mubr.f32.gmra.mrb[0].mxu0 %v73
    %v141 = vpop.f32.mrb[0].mxu0
    %v142 = vadd.f32 %v67, %v141
    %v143 = vpop.f32.mrb[0].mxu0
    %144 = vdwg.mxu0
    %v146 = vsel %vm71, %v69, 0
    %148 = vmatprep.subr.mxu0 0.0
    %149 = vmatpush1.msra.mxu0 %v63
    %150 = vmatprep.subr.mxu0 0.0
    %151 = vmatpush1.msra.mxu0 %v64
    %152 = vmatprep.subr.mxu0 0.0
    %153 = vmatpush1.msra.mxu0 %v65
    %154 = vmatprep.subr.mxu0 0.0
    %155 = vmatpush1.msra.mxu0 %v66
    %156 = vmatprep.subr.mxu0 0.0
    %157 = vmatpush1.msra.mxu0 0.0
    %158 = vmatprep.subr.mxu0 0.0
    %159 = vmatpush1.msra.mxu0 0.0
    %160 = vmatprep.subr.mxu0 0.0
    %161 = vmatpush1.msra.mxu0 0.0
    %162 = vmatprep.subr.mxu0 0.0
    %163 = vmatpush1.msra.mxu0 0.0
    %164 = vmatprep.subr.mxu0 0.0
    %165 = vmatpush1.msra.mxu0 0.0
    %166 = vmatprep.subr.mxu0 0.0
    %167 = vmatpush1.msra.mxu0 0.0
    %168 = vmatprep.subr.mxu0 0.0
    %169 = vmatpush1.msra.mxu0 0.0
    %170 = vmatprep.subr.mxu0 0.0
    %171 = vmatpush1.msra.mxu0 0.0
    %172 = vmatprep.subr.mxu0 0.0
    %173 = vmatpush1.msra.mxu0 0.0
    %174 = vmatprep.subr.mxu0 0.0
    %175 = vmatpush1.msra.mxu0 0.0
    %176 = vmatprep.subr.mxu0 0.0
    %177 = vmatpush1.msra.mxu0 0.0
    %178 = vmatprep.subr.mxu0 0.0
    %179 = vmatpush1.msra.mxu0 0.0
    %180 = vmatprep.subr.mxu0 0.0
    %181 = vmatpush1.msra.mxu0 0.0
    %182 = vmatprep.subr.mxu0 0.0
    %183 = vmatpush1.msra.mxu0 0.0
    %184 = vmatprep.subr.mxu0 0.0
    %185 = vmatpush1.msra.mxu0 0.0
    %186 = vmatprep.subr.mxu0 0.0
    %187 = vmatpush1.msra.mxu0 0.0
    %188 = vmatprep.subr.mxu0 0.0
    %189 = vmatpush1.msra.mxu0 0.0
    %190 = vmatprep.subr.mxu0 0.0
    %191 = vmatpush1.msra.mxu0 0.0
    %192 = vmatprep.subr.mxu0 0.0
    %193 = vmatpush1.msra.mxu0 0.0
    %194 = vmatprep.subr.mxu0 0.0
    %195 = vmatpush1.msra.mxu0 0.0
    %196 = vmatprep.subr.mxu0 0.0
    %197 = vmatpush1.msra.mxu0 0.0
    %198 = vmatprep.subr.mxu0 0.0
    %199 = vmatpush1.msra.mxu0 0.0
    %200 = vmatprep.subr.mxu0 0.0
    %201 = vmatpush1.msra.mxu0 0.0
    %202 = vmatprep.subr.mxu0 0.0
    %203 = vmatpush1.msra.mxu0 0.0
    %204 = vmatprep.subr.mxu0 0.0
    %205 = vmatpush1.msra.mxu0 0.0
    %206 = vmatprep.subr.mxu0 0.0
    %207 = vmatpush1.msra.mxu0 0.0
    %208 = vmatprep.subr.mxu0 0.0
    %209 = vmatpush1.msra.mxu0 0.0
    %210 = vmatprep.subr.mxu0 0.0
    %211 = vmatpush1.msra.mxu0 0.0
    %212 = vmatprep.mubr.f32.mxu0 0.0
    %213 = vmatmul.mubr.f32.gmra.mrb[0].mxu0 %v146
    %v214 = vpop.f32.mrb[0].mxu0
    %v215 = vadd.f32 %v68, %v214
    %v216 = vpop.f32.mrb[0].mxu0
    %217 = vdwg.mxu0
    %v218 = vadd.f32 %v142, %v215
    %v219 = vxor.u32 %v218, 2147483648
    %v220 = vmul.f32 %v219, 1.442695
    %v221 = vpow.pop %v220
    %v222 = vadd.f32 %v221, 1.0
    %v223 = vrcp.pop %v222
    %v224 = vmul.f32 1.0, %v223
    %226 = vrot.lane.b32.xlu0 %v215, 64
    %v227 = vpop.permute.xlu0 %226
    %v229 = vmul.f32 %v224, %v227
    %231 = vrot.lane.b32.xlu0 %v229, 64
    %v232 = vpop.permute.xlu0 %231
    %v234 = vadd.f32 %v142, %v232
    %v235 = vtanh.pop %v234
    %v236 = vsub.f32 1.0, %v224
    %238 = vrot.lane.b32.xlu0 %v235, 96
    %v239 = vpop.permute.xlu0 %238
    %v241 = vmul.f32 %v236, %v239
    %v242 = vlaneseq
    %v243 = vshrl.u32 %v242, 7
    %v244 = vsub.s32 0, %v243
    %v245 = vrot.slane %v69, %v244
    %246 = vrot.lane.b32.xlu0 %v245, 32
    %v247 = vpop.permute.xlu0 %246
    %v249 = vmul.f32 %v224, %v247
    %v250 = vadd.f32 %v241, %v249
    %v251 = vld [vmem:[%s6] sm:$0xff]
    %v252 = vld [vmem:[%s6 + $0x8] sm:$0xff]
    %v253 = vld [vmem:[%s6 + $0x10] sm:$0xff]
    %v254 = vld [vmem:[%s6 + $0x18] sm:$0xff]
    %v255 = vld [vmem:[%s7] sm:$0x1]
    %257 = vrot.lane.b32.xlu0 %v250, 96
    %v258 = vpop.permute.xlu0 %257
    %v259 = vsel %vm71, %v258, 0
    %261 = vmatprep.subr.mxu0 0.0
    %262 = vmatpush1.msra.mxu0 %v251
    %263 = vmatprep.subr.mxu0 0.0
    %264 = vmatpush1.msra.mxu0 %v252
    %265 = vmatprep.subr.mxu0 0.0
    %266 = vmatpush1.msra.mxu0 %v253
    %267 = vmatprep.subr.mxu0 0.0
    %268 = vmatpush1.msra.mxu0 %v254
    %269 = vmatprep.subr.mxu0 0.0
    %270 = vmatpush1.msra.mxu0 0.0
    %271 = vmatprep.subr.mxu0 0.0
    %272 = vmatpush1.msra.mxu0 0.0
    %273 = vmatprep.subr.mxu0 0.0
    %274 = vmatpush1.msra.mxu0 0.0
    %275 = vmatprep.subr.mxu0 0.0
    %276 = vmatpush1.msra.mxu0 0.0
    %277 = vmatprep.subr.mxu0 0.0
    %278 = vmatpush1.msra.mxu0 0.0
    %279 = vmatprep.subr.mxu0 0.0
    %280 = vmatpush1.msra.mxu0 0.0
    %281 = vmatprep.subr.mxu0 0.0
    %282 = vmatpush1.msra.mxu0 0.0
    %283 = vmatprep.subr.mxu0 0.0
    %284 = vmatpush1.msra.mxu0 0.0
    %285 = vmatprep.subr.mxu0 0.0
    %286 = vmatpush1.msra.mxu0 0.0
    %287 = vmatprep.subr.mxu0 0.0
    %288 = vmatpush1.msra.mxu0 0.0
    %289 = vmatprep.subr.mxu0 0.0
    %290 = vmatpush1.msra.mxu0 0.0
    %291 = vmatprep.subr.mxu0 0.0
    %292 = vmatpush1.msra.mxu0 0.0
    %293 = vmatprep.subr.mxu0 0.0
    %294 = vmatpush1.msra.mxu0 0.0
    %295 = vmatprep.subr.mxu0 0.0
    %296 = vmatpush1.msra.mxu0 0.0
    %297 = vmatprep.subr.mxu0 0.0
    %298 = vmatpush1.msra.mxu0 0.0
    %299 = vmatprep.subr.mxu0 0.0
    %300 = vmatpush1.msra.mxu0 0.0
    %301 = vmatprep.subr.mxu0 0.0
    %302 = vmatpush1.msra.mxu0 0.0
    %303 = vmatprep.subr.mxu0 0.0
    %304 = vmatpush1.msra.mxu0 0.0
    %305 = vmatprep.subr.mxu0 0.0
    %306 = vmatpush1.msra.mxu0 0.0
    %307 = vmatprep.subr.mxu0 0.0
    %308 = vmatpush1.msra.mxu0 0.0
    %309 = vmatprep.subr.mxu0 0.0
    %310 = vmatpush1.msra.mxu0 0.0
    %311 = vmatprep.subr.mxu0 0.0
    %312 = vmatpush1.msra.mxu0 0.0
    %313 = vmatprep.subr.mxu0 0.0
    %314 = vmatpush1.msra.mxu0 0.0
    %315 = vmatprep.subr.mxu0 0.0
    %316 = vmatpush1.msra.mxu0 0.0
    %317 = vmatprep.subr.mxu0 0.0
    %318 = vmatpush1.msra.mxu0 0.0
    %319 = vmatprep.subr.mxu0 0.0
    %320 = vmatpush1.msra.mxu0 0.0
    %321 = vmatprep.subr.mxu0 0.0
    %322 = vmatpush1.msra.mxu0 0.0
    %323 = vmatprep.subr.mxu0 0.0
    %324 = vmatpush1.msra.mxu0 0.0
    %325 = vmatprep.mubr.f32.mxu0 0.0
    %326 = vmatmul.mubr.f32.gmra.mrb[0].mxu0 %v259
    %v327 = vpop.f32.mrb[0].mxu0
    %v328 = vadd.f32 %v255, %v327
    %v329 = vpop.f32.mrb[0].mxu0
    %330 = vdwg.mxu0
    %vm331 = vcmask 122880
    %332 = vst.msk [vmem:[#allocation7] sm:$0x1] %vm331, %v328
    %vm334 = vcmask 253952
    %335 = vst.msk [vmem:[#allocation8] sm:$0x1] %vm334, %v258
    // Predicated region
    $region42: #{simple_lstm_forward.1} parent=1 // pred_check
      _
    $region43: #{simple_lstm_forward.1} parent=1 // pred_check_branch
      %337 = sbr.rel (0) target = $region45
    $region44: #{simple_lstm_forward.1} parent=1 // pred_region
      %s339 = ssub.s32 16, 16
      %340 = vsyncadd [#allocation4], %s339
      %s342 = sshll.u32 [#allocation7], 4
      %s343 = int_to_ptr.vmem [resolvable:$true] %s342
      %345 = dma.vmem_to_hbm [thread:$0]  %s343, 16, %s8, [#allocation4]
    $region45: #{simple_lstm_forward.1} parent=1 // pred_fallthru
      _
    // Predicated region
    $region46: #{simple_lstm_forward.1} parent=1 // pred_check
      _
    $region47: #{simple_lstm_forward.1} parent=1 // pred_check_branch
      %347 = sbr.rel (0) target = $region49
    $region48: #{simple_lstm_forward.1} parent=1 // pred_region
      %s349 = ssub.s32 16, 16
      %350 = vsyncadd [#allocation9], %s349
      %s352 = sshll.u32 [#allocation8], 4
      %s353 = int_to_ptr.vmem [resolvable:$true] %s352
      %355 = dma.vmem_to_hbm [thread:$0]  %s353, 16, %s9, [#allocation9]
    $region49: #{simple_lstm_forward.1} parent=1 // pred_fallthru
      _
    // Predicated region
    $region50: #{simple_lstm_forward.1} parent=1 // pred_check
      _
    $region51: #{simple_lstm_forward.1} parent=1 // pred_check_branch
      %357 = sbr.rel (0) target = $region53
    $region52: #{simple_lstm_forward.1} parent=1 // pred_region
      %358 = dma.done [#allocation4], 16
    $region53: #{simple_lstm_forward.1} parent=1 // pred_fallthru
      _
    // Predicated region
    $region54: #{simple_lstm_forward.1} parent=1 // pred_check
      _
    $region55: #{simple_lstm_forward.1} parent=1 // pred_check_branch
      %360 = sbr.rel (0) target = $region57
    $region56: #{simple_lstm_forward.1} parent=1 // pred_region
      %361 = dma.done [#allocation9], 16
    $region57: #{simple_lstm_forward.1} parent=1 // pred_fallthru
      _
    %362 = vsyncpa [#allocation3], 1
    %363 = vsyncpa [#allocation6], 1
    %364 = vsyncpa [#allocation4], 1
    %365 = vsyncpa [#allocation9], 1

</llo_original>
